<compile_context>
chip_gen: v5e
topology: v5e:2x2
jax: 0.10.0
libtpu: 0.0.40
codegen_flags: <defaults>
</compile_context>

<pallas_src>
import functools

import jax
import jax.numpy as jnp
from jax.experimental import pallas as pl
from jax.experimental.pallas import tpu as pltpu


# ----------------------------- Pallas kernel -------------------------------

def _lipschitz_dense_kernel(eta1_ref, x_ref, w1t_ref, b1t_ref, w2t_ref,
                            b2t_ref, o_ref):
    """One (batch-block, lane-tile) step of the fused network + concat.

    Channels-on-sublane / pixels-on-lane layout:
      eta1_ref: SMEM (1,)             -- normalized eta1
      x_ref   : VMEM (bb, C_in, TN)   -- input pixels (lanes = pixels)
      w1t_ref : VMEM (HID, C_in)      -- w1 transposed
      b1t_ref : VMEM (HID, 1)
      w2t_ref : VMEM (C_out, HID)     -- w2 transposed, eta2 pre-folded
      b2t_ref : VMEM (C_out, 1)       -- eta2 pre-folded
      o_ref   : VMEM (bb, C_in + C_out, TN)
    """
    eta1 = eta1_ref[0]

    # Hoist the tiny weight loads out of the batch-block loop.
    w1t = w1t_ref[...]
    b1t = b1t_ref[...]
    w2t = w2t_ref[...]
    b2t = b2t_ref[...]

    bb = x_ref.shape[0]
    # bb is a small static int (<= 8): a static unrolled loop keeps full
    # scheduler visibility.
    for b in range(bb):
        xb = x_ref[b]                                          # (C_in, TN)

        # network(x): per-pixel MLP on the MXU, channels on the sublane axis.
        # (K is tiny -> padded MXU, but the kernel stays HBM-bound; see notes.)
        h = jnp.dot(w1t, xb, preferred_element_type=jnp.float32)
        h = jnp.maximum(h + b1t, 0.0)                          # (HID, TN)
        out = jnp.dot(w2t, h, preferred_element_type=jnp.float32)
        out = out + b2t                                        # (C_out, TN)

        # torch.cat([x*eta1, out*eta2], dim=1): eta2 already folded into
        # w2t/b2t.  Assemble the full (C_total, TN) tile in registers and
        # issue ONE full-sublane, lane-dense store (no masked vst.msk pair).
        o_ref[b] = jnp.concatenate([xb * eta1, out], axis=0)


# ------------------------------ helpers -------------------------------------

def get_eta1_eta2(k1_unnorm, k2_unnorm, lip_coeff=0.98, beta=0.1):
    """Scalar parameter setup, identical math to the PyTorch module."""
    eta1 = jax.nn.softplus(k1_unnorm) + beta
    eta2 = jax.nn.softplus(k2_unnorm) + beta
    divider = jnp.sqrt(eta1 ** 2 + eta2 ** 2)
    return eta1 / divider * lip_coeff, eta2 / divider * lip_coeff


def _pick_lane_tile(hw, max_tn):
    """Largest lane tile <= max_tn that divides hw (multiple of 128), else hw."""
    if hw <= max_tn:
        return hw                         # full-extent lane block (always legal)
    if hw % 128 != 0:
        return hw                         # fall back to full extent (legal)
    best = 128
    cand = 128
    while cand <= max_tn:
        if hw % cand == 0:
            best = cand
        cand += 128
    return best


def _pick_batch_block(batch, per_image_step_bytes, target_bytes, max_bb=8):
    """Largest divisor of `batch` (<= max_bb) keeping the step under target."""
    bb = 1
    for cand in range(1, min(batch, max_bb) + 1):
        if batch % cand == 0 and cand * per_image_step_bytes <= target_bytes:
            bb = cand
    return bb


# ------------------------------ wrapper --------------------------------------

@functools.partial(jax.jit, static_argnames=("max_tn", "target_step_bytes"))
def lipschitz_dense_forward(x_nchw, params, max_tn=65536,
                            target_step_bytes=4 * 1024 * 1024):
    """x_nchw: (B, C_in, H, W) float32. Returns (B, C_in + C_out, H, W)."""
    w1, b1, w2, b2, k1, k2 = (params["w1"], params["b1"], params["w2"],
                              params["b2"], params["k1"], params["k2"])
    B, C_in, H, W = x_nchw.shape
    HID = w1.shape[1]
    C_out = w2.shape[1]
    C_total = C_in + C_out

    eta1, eta2 = get_eta1_eta2(k1, k2)
    eta1_arr = jnp.reshape(eta1, (1,)).astype(jnp.float32)      # -> SMEM

    # Tiny weights: pre-transpose for the channels-on-sublane layout and fold
    # eta2 into the second layer once (out * eta2 == (w2*eta2)^T h + b2*eta2).
    w1t = jnp.transpose(w1).astype(jnp.float32)                 # (HID, C_in)
    b1t = jnp.reshape(b1, (HID, 1)).astype(jnp.float32)         # (HID, 1)
    w2t = jnp.transpose(w2 * eta2).astype(jnp.float32)          # (C_out, HID)
    b2t = jnp.reshape(b2 * eta2, (C_out, 1)).astype(jnp.float32)

    # NCHW -> (B, C_in, H*W) is a pure reshape: no transpose, no data movement.
    HW = H * W
    x3d = x_nchw.reshape(B, C_in, HW)

    # ---- tile sizing (generation-agnostic heuristic) -----------------------
    tn = _pick_lane_tile(HW, max_tn)
    per_image_step_bytes = (C_in + C_total) * tn * 4            # in + out per image
    bb = _pick_batch_block(B, per_image_step_bytes, target_step_bytes)
    grid = (B // bb, HW // tn)

    # Derive VMEM budget from the actual footprint (double-buffered activations
    # + weights); covers v5e's 16 MiB default scoped VMEM at large tiles while
    # staying under v7x's 64 MiB physical VMEM.
    bytes_act = 2 * bb * (C_in + C_total) * tn * 4
    bytes_w = 2 * (HID * C_in + HID + C_out * HID + C_out) * 4
    vmem_limit = int(min(max(bytes_act + bytes_w + (8 << 20), 32 << 20),
                         64 << 20))

    out3d = pl.pallas_call(
        _lipschitz_dense_kernel,
        out_shape=jax.ShapeDtypeStruct((B, C_total, HW), jnp.float32),
        grid_spec=pltpu.PrefetchScalarGridSpec(
            num_scalar_prefetch=0,
            grid=grid,
            in_specs=[
                pl.BlockSpec(memory_space=pltpu.MemorySpace.SMEM),      # eta1 (1,)
                pl.BlockSpec((bb, C_in, tn), lambda i, j: (i, 0, j)),   # x
                pl.BlockSpec((HID, C_in), lambda i, j: (0, 0)),         # w1^T
                pl.BlockSpec((HID, 1), lambda i, j: (0, 0)),            # b1^T
                pl.BlockSpec((C_out, HID), lambda i, j: (0, 0)),        # (w2*eta2)^T
                pl.BlockSpec((C_out, 1), lambda i, j: (0, 0)),          # (b2*eta2)^T
            ],
            out_specs=pl.BlockSpec((bb, C_total, tn), lambda i, j: (i, 0, j)),
        ),
        compiler_params=pltpu.CompilerParams(
            dimension_semantics=("parallel", "parallel"),
            vmem_limit_bytes=vmem_limit),
    )(eta1_arr, x3d, w1t, b1t, w2t, b2t)

    # (B, C_total, H*W) -> NCHW is again a pure reshape.
    return out3d.reshape(B, C_total, H, W)


# Pure-JAX reference for correctness checking (mirrors the PyTorch module).
def reference_forward(x_nchw, params):
    w1, b1, w2, b2, k1, k2 = (params["w1"], params["b1"], params["w2"],
                              params["b2"], params["k1"], params["k2"])
    eta1, eta2 = get_eta1_eta2(k1, k2)
    B, C_in, H, W = x_nchw.shape
    x2d = jnp.transpose(x_nchw, (0, 2, 3, 1)).reshape(-1, C_in)
    h = jnp.maximum(x2d @ w1 + b1, 0.0)
    out = h @ w2 + b2
    cat = jnp.concatenate([x2d * eta1, out * eta2], axis=-1)
    cat = cat.reshape(B, H, W, -1)
    return jnp.transpose(cat, (0, 3, 1, 2))


if __name__ == "__main__":
    # Small shapes consistent with an NCHW dense-net block.
    B, C_in, H, W = 2, 4, 16, 16
    HID, C_out = 32, 4

    key = jax.random.PRNGKey(0)
    kx, kw1, kb1, kw2, kb2 = jax.random.split(key, 5)

    x = jax.random.normal(kx, (B, C_in, H, W), dtype=jnp.float32)
    params = {
        "w1": jax.random.normal(kw1, (C_in, HID), dtype=jnp.float32) * 0.2,
        "b1": jax.random.normal(kb1, (1, HID), dtype=jnp.float32) * 0.1,
        "w2": jax.random.normal(kw2, (HID, C_out), dtype=jnp.float32) * 0.2,
        "b2": jax.random.normal(kb2, (1, C_out), dtype=jnp.float32) * 0.1,
        # K1_unnormalized / K2_unnormalized buffers initialized to 1.0
        "k1": jnp.float32(1.0),
        "k2": jnp.float32(1.0),
    }

    y = lipschitz_dense_forward(x, params)
    jax.block_until_ready(y)

    y_ref = reference_forward(x, params)
    assert y.shape == (B, C_in + C_out, H, W), y.shape
    assert jnp.allclose(y, y_ref, atol=1e-5, rtol=1e-5), (
        float(jnp.max(jnp.abs(y - y_ref))))

    print("KERNEL_OK")
</pallas_src>

<mosaic_0001>
module attributes {stable_mosaic.version = 11 : i64} {
  func.func @_lipschitz_dense_kernel(%arg0: i32, %arg1: i32, %arg2: memref<1xf32, #tpu.memory_space<smem>>, %arg3: memref<2x4x256xf32, #tpu.memory_space<vmem>>, %arg4: memref<32x4xf32, #tpu.memory_space<vmem>>, %arg5: memref<32x1xf32, #tpu.memory_space<vmem>>, %arg6: memref<4x32xf32, #tpu.memory_space<vmem>>, %arg7: memref<4x1xf32, #tpu.memory_space<vmem>>, %arg8: memref<2x8x256xf32, #tpu.memory_space<vmem>>) attributes {dimension_semantics = [#tpu.dimension_semantics<parallel>, #tpu.dimension_semantics<parallel>], iteration_bounds = array<i64: 1, 1>, scalar_prefetch = 0 : i64, scratch_operands = 0 : i64, tpu.core_type = #tpu.core_type<tc>, window_params = [{transform_indices = @transform_0, window_bounds = array<i64: 1>}, {transform_indices = @transform_1, window_bounds = array<i64: 2, 4, 256>}, {pipeline_mode = #tpu.pipeline_mode<synchronous>, transform_indices = @transform_2, window_bounds = array<i64: 32, 4>}, {pipeline_mode = #tpu.pipeline_mode<synchronous>, transform_indices = @transform_3, window_bounds = array<i64: 32, 1>}, {pipeline_mode = #tpu.pipeline_mode<synchronous>, transform_indices = @transform_4, window_bounds = array<i64: 4, 32>}, {pipeline_mode = #tpu.pipeline_mode<synchronous>, transform_indices = @transform_5, window_bounds = array<i64: 4, 1>}, {transform_indices = @transform_6, window_bounds = array<i64: 2, 8, 256>}]} {
    %c0 = arith.constant 0 : index
    %0 = memref.load %arg2[%c0] : memref<1xf32, #tpu.memory_space<smem>>
    %c0_0 = arith.constant 0 : index
    %c0_1 = arith.constant 0 : index
    %1 = vector.load %arg4[%c0_0, %c0_1] : memref<32x4xf32, #tpu.memory_space<vmem>>, vector<32x4xf32>
    %c0_2 = arith.constant 0 : index
    %c0_3 = arith.constant 0 : index
    %2 = vector.load %arg5[%c0_2, %c0_3] : memref<32x1xf32, #tpu.memory_space<vmem>>, vector<32x1xf32>
    %c0_4 = arith.constant 0 : index
    %c0_5 = arith.constant 0 : index
    %3 = vector.load %arg6[%c0_4, %c0_5] : memref<4x32xf32, #tpu.memory_space<vmem>>, vector<4x32xf32>
    %c0_6 = arith.constant 0 : index
    %c0_7 = arith.constant 0 : index
    %4 = vector.load %arg7[%c0_6, %c0_7] : memref<4x1xf32, #tpu.memory_space<vmem>>, vector<4x1xf32>
    %c0_8 = arith.constant 0 : index
    %c0_9 = arith.constant 0 : index
    %c0_10 = arith.constant 0 : index
    %5 = vector.load %arg3[%c0_8, %c0_9, %c0_10] : memref<2x4x256xf32, #tpu.memory_space<vmem>>, vector<1x4x256xf32>
    %6 = vector.shape_cast %5 : vector<1x4x256xf32> to vector<4x256xf32>
    %cst = arith.constant dense<0.000000e+00> : vector<32x256xf32>
    %7 = tpu.matmul %1, %6, %cst {dimension_numbers = #tpu.dot_dimension_numbers<[1], [0], [0], [1], [0, 0, 1, 1], [], []>} : vector<32x4xf32>, vector<4x256xf32>, vector<32x256xf32> -> vector<32x256xf32>
    %8 = vector.broadcast %2 : vector<32x1xf32> to vector<32x256xf32>
    %9 = arith.addf %7, %8 : vector<32x256xf32>
    %cst_11 = arith.constant 0.000000e+00 : f32
    %10 = vector.broadcast %cst_11 : f32 to vector<32x256xf32>
    %11 = arith.maximumf %9, %10 : vector<32x256xf32>
    %cst_12 = arith.constant dense<0.000000e+00> : vector<4x256xf32>
    %12 = tpu.matmul %3, %11, %cst_12 {dimension_numbers = #tpu.dot_dimension_numbers<[1], [0], [0], [1], [0, 0, 1, 1], [], []>} : vector<4x32xf32>, vector<32x256xf32>, vector<4x256xf32> -> vector<4x256xf32>
    %13 = vector.broadcast %4 : vector<4x1xf32> to vector<4x256xf32>
    %14 = arith.addf %12, %13 : vector<4x256xf32>
    %15 = vector.broadcast %0 : f32 to vector<4x256xf32>
    %16 = arith.mulf %6, %15 : vector<4x256xf32>
    %17 = tpu.concatenate %16, %14 in 0 : vector<4x256xf32>, vector<4x256xf32> -> vector<8x256xf32>
    %c0_13 = arith.constant 0 : index
    %c0_14 = arith.constant 0 : index
    %c0_15 = arith.constant 0 : index
    %18 = vector.load %arg8[%c0_13, %c0_14, %c0_15] : memref<2x8x256xf32, #tpu.memory_space<vmem>>, vector<1x8x256xf32>
    %19 = vector.shape_cast %18 : vector<1x8x256xf32> to vector<8x256xf32>
    %20 = vector.shape_cast %17 : vector<8x256xf32> to vector<1x8x256xf32>
    tpu.vector_store %arg8[%c0_13, %c0_14, %c0_15], %20 {strides = array<i32>} : memref<2x8x256xf32, #tpu.memory_space<vmem>>, vector<1x8x256xf32>,
    %c1 = arith.constant 1 : index
    %c0_16 = arith.constant 0 : index
    %c0_17 = arith.constant 0 : index
    %21 = vector.load %arg3[%c1, %c0_16, %c0_17] : memref<2x4x256xf32, #tpu.memory_space<vmem>>, vector<1x4x256xf32>
    %22 = vector.shape_cast %21 : vector<1x4x256xf32> to vector<4x256xf32>
    %cst_18 = arith.constant dense<0.000000e+00> : vector<32x256xf32>
    %23 = tpu.matmul %1, %22, %cst_18 {dimension_numbers = #tpu.dot_dimension_numbers<[1], [0], [0], [1], [0, 0, 1, 1], [], []>} : vector<32x4xf32>, vector<4x256xf32>, vector<32x256xf32> -> vector<32x256xf32>
    %24 = vector.broadcast %2 : vector<32x1xf32> to vector<32x256xf32>
    %25 = arith.addf %23, %24 : vector<32x256xf32>
    %cst_19 = arith.constant 0.000000e+00 : f32
    %26 = vector.broadcast %cst_19 : f32 to vector<32x256xf32>
    %27 = arith.maximumf %25, %26 : vector<32x256xf32>
    %cst_20 = arith.constant dense<0.000000e+00> : vector<4x256xf32>
    %28 = tpu.matmul %3, %27, %cst_20 {dimension_numbers = #tpu.dot_dimension_numbers<[1], [0], [0], [1], [0, 0, 1, 1], [], []>} : vector<4x32xf32>, vector<32x256xf32>, vector<4x256xf32> -> vector<4x256xf32>
    %29 = vector.broadcast %4 : vector<4x1xf32> to vector<4x256xf32>
    %30 = arith.addf %28, %29 : vector<4x256xf32>
    %31 = vector.broadcast %0 : f32 to vector<4x256xf32>
    %32 = arith.mulf %22, %31 : vector<4x256xf32>
    %33 = tpu.concatenate %32, %30 in 0 : vector<4x256xf32>, vector<4x256xf32> -> vector<8x256xf32>
    %c1_21 = arith.constant 1 : index
    %c0_22 = arith.constant 0 : index
    %c0_23 = arith.constant 0 : index
    %34 = vector.load %arg8[%c1_21, %c0_22, %c0_23] : memref<2x8x256xf32, #tpu.memory_space<vmem>>, vector<1x8x256xf32>
    %35 = vector.shape_cast %34 : vector<1x8x256xf32> to vector<8x256xf32>
    %36 = vector.shape_cast %33 : vector<8x256xf32> to vector<1x8x256xf32>
    tpu.vector_store %arg8[%c1_21, %c0_22, %c0_23], %36 {strides = array<i32>} : memref<2x8x256xf32, #tpu.memory_space<vmem>>, vector<1x8x256xf32>,
    return
  }
  func.func @transform_0(%arg0: i32, %arg1: i32) -> i32 {
    %c0_i32 = arith.constant 0 : i32
    %c0_i32_0 = arith.constant 0 : i32
    return %c0_i32 : i32
  }
  func.func @transform_1(%arg0: i32, %arg1: i32) -> (i32, i32, i32) {
    %c0_i32 = arith.constant 0 : i32
    %c0_i32_0 = arith.constant 0 : i32
    return %arg0, %c0_i32, %arg1 : i32, i32, i32
  }
  func.func @transform_2(%arg0: i32, %arg1: i32) -> (i32, i32) {
    %c0_i32 = arith.constant 0 : i32
    %c0_i32_0 = arith.constant 0 : i32
    %c0_i32_1 = arith.constant 0 : i32
    return %c0_i32, %c0_i32_0 : i32, i32
  }
  func.func @transform_3(%arg0: i32, %arg1: i32) -> (i32, i32) {
    %c0_i32 = arith.constant 0 : i32
    %c0_i32_0 = arith.constant 0 : i32
    %c0_i32_1 = arith.constant 0 : i32
    return %c0_i32, %c0_i32_0 : i32, i32
  }
  func.func @transform_4(%arg0: i32, %arg1: i32) -> (i32, i32) {
    %c0_i32 = arith.constant 0 : i32
    %c0_i32_0 = arith.constant 0 : i32
    %c0_i32_1 = arith.constant 0 : i32
    return %c0_i32, %c0_i32_0 : i32, i32
  }
  func.func @transform_5(%arg0: i32, %arg1: i32) -> (i32, i32) {
    %c0_i32 = arith.constant 0 : i32
    %c0_i32_0 = arith.constant 0 : i32
    %c0_i32_1 = arith.constant 0 : i32
    return %c0_i32, %c0_i32_0 : i32, i32
  }
  func.func @transform_6(%arg0: i32, %arg1: i32) -> (i32, i32, i32) {
    %c0_i32 = arith.constant 0 : i32
    %c0_i32_0 = arith.constant 0 : i32
    return %arg0, %c0_i32, %arg1 : i32, i32, i32
  }
}

</mosaic_0001>

<llo_original>
// kernel: lipschitz_dense_forward.1
$region0: #{lipschitz_dense_forward.1}
  #allocation0 [shape = 'u32[]', space=smem, size = 0x4, offset = 0x4, fixed_abs, tag = 'smem constant byte address 0x4 - core index']
  #allocation1 [shape = 'u32[72,128]{1,0:T(1,128)}', space=vmem, size = 0x9000, scoped, tag = 'internal scratch']
  #allocation2 [shape = 'f32[1]{0:T(128)S(6)}', space=smem, size = 0x200, scoped, tag = 'scoped memory for lipschitz_dense_forward.1']
  %s0 = inlined_call_operand.<no memory space> [shape: f32[1], index: 0, kind: input, shape index: {}]
  %s1 = inlined_call_operand.vmem [shape: f32[2,4,256], index: 1, kind: input, shape index: {}]
  %s2 = inlined_call_operand.vmem [shape: f32[32,4], index: 2, kind: input, shape index: {}]
  %s3 = inlined_call_operand.vmem [shape: f32[32,1], index: 3, kind: input, shape index: {}]
  %s4 = inlined_call_operand.vmem [shape: f32[4,32], index: 4, kind: input, shape index: {}]
  %s5 = inlined_call_operand.vmem [shape: f32[4,1], index: 5, kind: input, shape index: {}]
  %s6 = inlined_call_operand.vmem [shape: f32[2,8,256], index: 6, kind: output, shape index: {}]
  %s7 = sld [smem:[#allocation0]]
  $region34: #{lipschitz_dense_forward.1} parent=0
    _
  %s9 = ssub.s32 1, %s7
  %s10 = scalar_select 0, %s9, %s7
  %11 = sst [smem:[#allocation2]] %s0
  // Predicated region
  $region2: #{lipschitz_dense_forward.1} parent=0 // pred_check
    _
  $region3: #{lipschitz_dense_forward.1} parent=0 // pred_check_branch
    %13 = sbr.rel (0) target = $region5
  $region4: #{lipschitz_dense_forward.1} parent=0 // pred_region
    _
  $region5: #{lipschitz_dense_forward.1} parent=0 // pred_fallthru
    _
  // Predicated region
  $region6: #{lipschitz_dense_forward.1} parent=0 // pred_check
    _
  $region7: #{lipschitz_dense_forward.1} parent=0 // pred_check_branch
    %15 = sbr.rel (0) target = $region9
  $region8: #{lipschitz_dense_forward.1} parent=0 // pred_region
    _
  $region9: #{lipschitz_dense_forward.1} parent=0 // pred_fallthru
    _
  // Predicated region
  $region10: #{lipschitz_dense_forward.1} parent=0 // pred_check
    _
  $region11: #{lipschitz_dense_forward.1} parent=0 // pred_check_branch
    %17 = sbr.rel (0) target = $region13
  $region12: #{lipschitz_dense_forward.1} parent=0 // pred_region
    _
  $region13: #{lipschitz_dense_forward.1} parent=0 // pred_fallthru
    _
  // Predicated region
  $region14: #{lipschitz_dense_forward.1} parent=0 // pred_check
    _
  $region15: #{lipschitz_dense_forward.1} parent=0 // pred_check_branch
    %19 = sbr.rel (0) target = $region17
  $region16: #{lipschitz_dense_forward.1} parent=0 // pred_region
    _
  $region17: #{lipschitz_dense_forward.1} parent=0 // pred_fallthru
    _
  // Predicated region
  $region18: #{lipschitz_dense_forward.1} parent=0 // pred_check
    _
  $region19: #{lipschitz_dense_forward.1} parent=0 // pred_check_branch
    %21 = sbr.rel (0) target = $region21
  $region20: #{lipschitz_dense_forward.1} parent=0 // pred_region
    _
  $region21: #{lipschitz_dense_forward.1} parent=0 // pred_fallthru
    _
  // Predicated region
  $region22: #{lipschitz_dense_forward.1} parent=0 // pred_check
    _
  $region23: #{lipschitz_dense_forward.1} parent=0 // pred_check_branch
    %23 = sbr.rel (0) target = $region25
  $region24: #{lipschitz_dense_forward.1} parent=0 // pred_region
    _
  $region25: #{lipschitz_dense_forward.1} parent=0 // pred_fallthru
    _
  %s24 = sld [smem:[#allocation2]]
  %v25 = vld [vmem:[%s2] sm:$0xff]
  %v26 = vld [vmem:[%s2 + $0x8] sm:$0xff]
  %v27 = vld [vmem:[%s2 + $0x10] sm:$0xff]
  %v28 = vld [vmem:[%s2 + $0x18] sm:$0xff]
  %v29 = vld [vmem:[%s3] sm:$0xff]
  %v30 = vld [vmem:[%s3 + $0x8] sm:$0xff]
  %v31 = vld [vmem:[%s3 + $0x10] sm:$0xff]
  %v32 = vld [vmem:[%s3 + $0x18] sm:$0xff]
  %v33 = vld [vmem:[%s4] sm:$0xf]
  %v34 = vld [vmem:[%s5] sm:$0xf]
  %v35 = vld [vmem:[%s1] sm:$0xff]
  %37 = vset.pattern.permute.xlu0 0
  %38 = vperm.xlu0 %37, %v29
  %v39 = vpop.permute.xlu0 %38
  %42 = vset.pattern.permute.xlu0 0
  %43 = vperm.xlu0 %42, %v30
  %v44 = vpop.permute.xlu0 %43
  %47 = vset.pattern.permute.xlu0 0
  %48 = vperm.xlu0 %47, %v31
  %v49 = vpop.permute.xlu0 %48
  %52 = vset.pattern.permute.xlu0 0
  %53 = vperm.xlu0 %52, %v32
  %v54 = vpop.permute.xlu0 %53
  %57 = vst [vmem:[#allocation1] ss:$2 sm:$0xff] %v35
  %v58 = vld.sshfl [vmem:[#allocation1] sm:$0xff pattern:$0x75316420]
  %v59 = vld.sshfl [vmem:[#allocation1 + $0x8] sm:$0xff pattern:$0x75316420]
  %vm60 = vcmask 31744
  %v62 = vsel %vm60, %v25, 0
  %v65 = vsel %vm60, %v26, 0
  %v68 = vsel %vm60, %v27, 0
  %v71 = vsel %vm60, %v28, 0
  %vm73 = vcmask 1043456
  %v74 = vsel %vm73, %v58, 0
  %v76 = vsel %vm73, %v59, 0
  %78 = vmatpush.msra.mxu0 0.0
  %79 = vmatpush.msra.mxu0 0.0
  %80 = vmatpush.msra.mxu0 0.0
  %81 = vmatpush.msra.mxu0 0.0
  %82 = vmatpush.msra.mxu0 0.0
  %83 = vmatpush.msra.mxu0 0.0
  %84 = vmatpush.msra.mxu0 0.0
  %85 = vmatpush.msra.mxu0 0.0
  %86 = vmatpush.msra.mxu0 0.0
  %87 = vmatpush.msra.mxu0 0.0
  %88 = vmatpush.msra.mxu0 0.0
  %89 = vmatpush.msra.mxu0 0.0
  %90 = vmatpush.msra.mxu0 0.0
  %91 = vmatpush.msra.mxu0 0.0
  %92 = vmatpush.msra.mxu0 0.0
  %93 = vmatpush.msra.mxu0 %v74
  %94 = vmatmul.f32.gmra.mxu0 %v62
  %v95 = vpop.f32.mrf.mxu0
  %v96 = vadd.f32 %v39, %v95
  %97 = vmatmul.f32.gmra.mxu0 %v65
  %v98 = vpop.f32.mrf.mxu0
  %v99 = vadd.f32 %v44, %v98
  %100 = vmatmul.f32.gmra.mxu0 %v68
  %v101 = vpop.f32.mrf.mxu0
  %v102 = vadd.f32 %v49, %v101
  %103 = vmatmul.f32.gmra.mxu0 %v71
  %v104 = vpop.f32.mrf.mxu0
  %v105 = vadd.f32 %v54, %v104
  %106 = vdwg.mxu0
  %107 = vmatpush.msra.mxu0 0.0
  %108 = vmatpush.msra.mxu0 0.0
  %109 = vmatpush.msra.mxu0 0.0
  %110 = vmatpush.msra.mxu0 0.0
  %111 = vmatpush.msra.mxu0 0.0
  %112 = vmatpush.msra.mxu0 0.0
  %113 = vmatpush.msra.mxu0 0.0
  %114 = vmatpush.msra.mxu0 0.0
  %115 = vmatpush.msra.mxu0 0.0
  %116 = vmatpush.msra.mxu0 0.0
  %117 = vmatpush.msra.mxu0 0.0
  %118 = vmatpush.msra.mxu0 0.0
  %119 = vmatpush.msra.mxu0 0.0
  %120 = vmatpush.msra.mxu0 0.0
  %121 = vmatpush.msra.mxu0 0.0
  %122 = vmatpush.msra.mxu0 %v76
  %123 = vmatmul.f32.gmra.mxu0 %v62
  %v124 = vpop.f32.mrf.mxu0
  %v125 = vadd.f32 %v39, %v124
  %126 = vmatmul.f32.gmra.mxu0 %v65
  %v127 = vpop.f32.mrf.mxu0
  %v128 = vadd.f32 %v44, %v127
  %129 = vmatmul.f32.gmra.mxu0 %v68
  %v130 = vpop.f32.mrf.mxu0
  %v131 = vadd.f32 %v49, %v130
  %132 = vmatmul.f32.gmra.mxu0 %v71
  %v133 = vpop.f32.mrf.mxu0
  %v134 = vadd.f32 %v54, %v133
  %135 = vdwg.mxu0
  %v136 = vmax.f32 %v96, 0.0
  %v137 = vmax.f32 %v125, 0.0
  %v138 = vmax.f32 %v99, 0.0
  %v139 = vmax.f32 %v128, 0.0
  %v140 = vmax.f32 %v102, 0.0
  %v141 = vmax.f32 %v131, 0.0
  %v142 = vmax.f32 %v105, 0.0
  %v143 = vmax.f32 %v134, 0.0
  %145 = vset.pattern.permute.xlu0 0
  %146 = vperm.xlu0 %145, %v34
  %v147 = vpop.permute.xlu0 %146
  %vm149 = vcmask 261120
  %v151 = vsel %vm149, %v33, 0
  %153 = vmatpush.msra.mxu0 0.0
  %154 = vmatpush.msra.mxu0 0.0
  %155 = vmatpush.msra.mxu0 0.0
  %156 = vmatpush.msra.mxu0 0.0
  %157 = vmatpush.msra.mxu0 0.0
  %158 = vmatpush.msra.mxu0 0.0
  %159 = vmatpush.msra.mxu0 0.0
  %160 = vmatpush.msra.mxu0 0.0
  %161 = vmatpush.msra.mxu0 0.0
  %162 = vmatpush.msra.mxu0 0.0
  %163 = vmatpush.msra.mxu0 0.0
  %164 = vmatpush.msra.mxu0 0.0
  %165 = vmatpush.msra.mxu0 %v142
  %166 = vmatpush.msra.mxu0 %v140
  %167 = vmatpush.msra.mxu0 %v138
  %168 = vmatpush.msra.mxu0 %v136
  %169 = vmatmul.f32.gmra.mxu0 %v151
  %v170 = vpop.f32.mrf.mxu0
  %v171 = vadd.f32 %v147, %v170
  %172 = vdwg.mxu0
  %173 = vmatpush.msra.mxu0 0.0
  %174 = vmatpush.msra.mxu0 0.0
  %175 = vmatpush.msra.mxu0 0.0
  %176 = vmatpush.msra.mxu0 0.0
  %177 = vmatpush.msra.mxu0 0.0
  %178 = vmatpush.msra.mxu0 0.0
  %179 = vmatpush.msra.mxu0 0.0
  %180 = vmatpush.msra.mxu0 0.0
  %181 = vmatpush.msra.mxu0 0.0
  %182 = vmatpush.msra.mxu0 0.0
  %183 = vmatpush.msra.mxu0 0.0
  %184 = vmatpush.msra.mxu0 0.0
  %185 = vmatpush.msra.mxu0 %v143
  %186 = vmatpush.msra.mxu0 %v141
  %187 = vmatpush.msra.mxu0 %v139
  %188 = vmatpush.msra.mxu0 %v137
  %189 = vmatmul.f32.gmra.mxu0 %v151
  %v190 = vpop.f32.mrf.mxu0
  %v191 = vadd.f32 %v147, %v190
  %192 = vdwg.mxu0
  %v193 = vstv %s24
  %v194 = vmul.f32 %v35, %v193
  %196 = vst [vmem:[#allocation1] ss:$2 sm:$0xff] %v194
  %v197 = vld.sshfl [vmem:[#allocation1] sm:$0xff pattern:$0x75316420]
  %v198 = vld.sshfl [vmem:[#allocation1 + $0x8] sm:$0xff pattern:$0x75316420]
  %v203 = vrot.slane %v171, 4
  %v204 = vrot.slane %v191, 4
  %v207 = vsel %vm73, %v197, %v203
  %v208 = vsel %vm73, %v198, %v204
  %209 = vst [vmem:[%s6] sm:$0xff] %v207
  %210 = vst [vmem:[%s6 + $0x8] sm:$0xff] %v208
  %s211 = scalar_lea.vmem %s1, 8
  %v212 = vld [vmem:[%s211] sm:$0xff]
  %214 = vst [vmem:[#allocation1] ss:$2 sm:$0xff] %v212
  %v215 = vld.sshfl [vmem:[#allocation1] sm:$0xff pattern:$0x75316420]
  %v216 = vld.sshfl [vmem:[#allocation1 + $0x8] sm:$0xff pattern:$0x75316420]
  %v217 = vsel %vm73, %v215, 0
  %v219 = vsel %vm73, %v216, 0
  %221 = vmatpush.msra.mxu0 0.0
  %222 = vmatpush.msra.mxu0 0.0
  %223 = vmatpush.msra.mxu0 0.0
  %224 = vmatpush.msra.mxu0 0.0
  %225 = vmatpush.msra.mxu0 0.0
  %226 = vmatpush.msra.mxu0 0.0
  %227 = vmatpush.msra.mxu0 0.0
  %228 = vmatpush.msra.mxu0 0.0
  %229 = vmatpush.msra.mxu0 0.0
  %230 = vmatpush.msra.mxu0 0.0
  %231 = vmatpush.msra.mxu0 0.0
  %232 = vmatpush.msra.mxu0 0.0
  %233 = vmatpush.msra.mxu0 0.0
  %234 = vmatpush.msra.mxu0 0.0
  %235 = vmatpush.msra.mxu0 0.0
  %236 = vmatpush.msra.mxu0 %v217
  %237 = vmatmul.f32.gmra.mxu0 %v62
  %v238 = vpop.f32.mrf.mxu0
  %v239 = vadd.f32 %v39, %v238
  %240 = vmatmul.f32.gmra.mxu0 %v65
  %v241 = vpop.f32.mrf.mxu0
  %v242 = vadd.f32 %v44, %v241
  %243 = vmatmul.f32.gmra.mxu0 %v68
  %v244 = vpop.f32.mrf.mxu0
  %v245 = vadd.f32 %v49, %v244
  %246 = vmatmul.f32.gmra.mxu0 %v71
  %v247 = vpop.f32.mrf.mxu0
  %v248 = vadd.f32 %v54, %v247
  %249 = vdwg.mxu0
  %250 = vmatpush.msra.mxu0 0.0
  %251 = vmatpush.msra.mxu0 0.0
  %252 = vmatpush.msra.mxu0 0.0
  %253 = vmatpush.msra.mxu0 0.0
  %254 = vmatpush.msra.mxu0 0.0
  %255 = vmatpush.msra.mxu0 0.0
  %256 = vmatpush.msra.mxu0 0.0
  %257 = vmatpush.msra.mxu0 0.0
  %258 = vmatpush.msra.mxu0 0.0
  %259 = vmatpush.msra.mxu0 0.0
  %260 = vmatpush.msra.mxu0 0.0
  %261 = vmatpush.msra.mxu0 0.0
  %262 = vmatpush.msra.mxu0 0.0
  %263 = vmatpush.msra.mxu0 0.0
  %264 = vmatpush.msra.mxu0 0.0
  %265 = vmatpush.msra.mxu0 %v219
  %266 = vmatmul.f32.gmra.mxu0 %v62
  %v267 = vpop.f32.mrf.mxu0
  %v268 = vadd.f32 %v39, %v267
  %269 = vmatmul.f32.gmra.mxu0 %v65
  %v270 = vpop.f32.mrf.mxu0
  %v271 = vadd.f32 %v44, %v270
  %272 = vmatmul.f32.gmra.mxu0 %v68
  %v273 = vpop.f32.mrf.mxu0
  %v274 = vadd.f32 %v49, %v273
  %275 = vmatmul.f32.gmra.mxu0 %v71
  %v276 = vpop.f32.mrf.mxu0
  %v277 = vadd.f32 %v54, %v276
  %278 = vdwg.mxu0
  %v279 = vmax.f32 %v239, 0.0
  %v280 = vmax.f32 %v268, 0.0
  %v281 = vmax.f32 %v242, 0.0
  %v282 = vmax.f32 %v271, 0.0
  %v283 = vmax.f32 %v245, 0.0
  %v284 = vmax.f32 %v274, 0.0
  %v285 = vmax.f32 %v248, 0.0
  %v286 = vmax.f32 %v277, 0.0
  %287 = vmatpush.msra.mxu0 0.0
  %288 = vmatpush.msra.mxu0 0.0
  %289 = vmatpush.msra.mxu0 0.0
  %290 = vmatpush.msra.mxu0 0.0
  %291 = vmatpush.msra.mxu0 0.0
  %292 = vmatpush.msra.mxu0 0.0
  %293 = vmatpush.msra.mxu0 0.0
  %294 = vmatpush.msra.mxu0 0.0
  %295 = vmatpush.msra.mxu0 0.0
  %296 = vmatpush.msra.mxu0 0.0
  %297 = vmatpush.msra.mxu0 0.0
  %298 = vmatpush.msra.mxu0 0.0
  %299 = vmatpush.msra.mxu0 %v285
  %300 = vmatpush.msra.mxu0 %v283
  %301 = vmatpush.msra.mxu0 %v281
  %302 = vmatpush.msra.mxu0 %v279
  %303 = vmatmul.f32.gmra.mxu0 %v151
  %v304 = vpop.f32.mrf.mxu0
  %v305 = vadd.f32 %v147, %v304
  %306 = vdwg.mxu0
  %307 = vmatpush.msra.mxu0 0.0
  %308 = vmatpush.msra.mxu0 0.0
  %309 = vmatpush.msra.mxu0 0.0
  %310 = vmatpush.msra.mxu0 0.0
  %311 = vmatpush.msra.mxu0 0.0
  %312 = vmatpush.msra.mxu0 0.0
  %313 = vmatpush.msra.mxu0 0.0
  %314 = vmatpush.msra.mxu0 0.0
  %315 = vmatpush.msra.mxu0 0.0
  %316 = vmatpush.msra.mxu0 0.0
  %317 = vmatpush.msra.mxu0 0.0
  %318 = vmatpush.msra.mxu0 0.0
  %319 = vmatpush.msra.mxu0 %v286
  %320 = vmatpush.msra.mxu0 %v284
  %321 = vmatpush.msra.mxu0 %v282
  %322 = vmatpush.msra.mxu0 %v280
  %323 = vmatmul.f32.gmra.mxu0 %v151
  %v324 = vpop.f32.mrf.mxu0
  %v325 = vadd.f32 %v147, %v324
  %326 = vdwg.mxu0
  %v327 = vmul.f32 %v212, %v193
  %329 = vst [vmem:[#allocation1] ss:$2 sm:$0xff] %v327
  %v330 = vld.sshfl [vmem:[#allocation1] sm:$0xff pattern:$0x75316420]
  %v331 = vld.sshfl [vmem:[#allocation1 + $0x8] sm:$0xff pattern:$0x75316420]
  %v336 = vrot.slane %v305, 4
  %v337 = vrot.slane %v325, 4
  %v340 = vsel %vm73, %v330, %v336
  %v341 = vsel %vm73, %v331, %v337
  %s342 = scalar_lea.vmem %s6, 16
  %343 = vst [vmem:[%s342] sm:$0xff] %v340
  %344 = vst [vmem:[%s342 + $0x8] sm:$0xff] %v341
  // Predicated region
  $region26: #{lipschitz_dense_forward.1} parent=0 // pred_check
    _
  $region27: #{lipschitz_dense_forward.1} parent=0 // pred_check_branch
    %346 = sbr.rel (0) target = $region29
  $region28: #{lipschitz_dense_forward.1} parent=0 // pred_region
    _
  $region29: #{lipschitz_dense_forward.1} parent=0 // pred_fallthru
    _
  // Predicated region
  $region30: #{lipschitz_dense_forward.1} parent=0 // pred_check
    _
  $region31: #{lipschitz_dense_forward.1} parent=0 // pred_check_branch
    %348 = sbr.rel (0) target = $region33
  $region32: #{lipschitz_dense_forward.1} parent=0 // pred_region
    _
  $region33: #{lipschitz_dense_forward.1} parent=0 // pred_fallthru
    _

</llo_original>
